<compile_context>
chip_gen: v7x
topology: tpu7x:2x2x1
jax: 0.10.0
libtpu: 0.0.40
codegen_flags: <defaults>
</compile_context>

<pallas_src>
import functools
import math

import jax
import jax.numpy as jnp
from jax.experimental import pallas as pl
from jax.experimental.pallas import tpu as pltpu


def _round_up(x, m):
    return ((x + m - 1) // m) * m


def _dist_kernel(gamma_ref, x_ref, yt_ref, xx_ref, yy_ref, o_ref, acc_ref,
                 *, fuse_exp):
    """Accumulate X @ Y^T over the D (k) grid axis; at the last k step add
    ||x||^2 + ||y||^2 and (optionally) apply exp(-gamma * dnorm2)."""
    k = pl.program_id(2)

    @pl.when(k == 0)
    def _init():
        acc_ref[...] = jnp.zeros_like(acc_ref)

    acc_ref[...] += jnp.dot(x_ref[...], yt_ref[...],
                            preferred_element_type=jnp.float32)

    @pl.when(k == pl.num_programs(2) - 1)
    def _finalize():
        dnorm2 = -2.0 * acc_ref[...] + xx_ref[...] + yy_ref[...]
        if fuse_exp:
            o_ref[...] = jnp.exp(-gamma_ref[0, 0] * dnorm2)
        else:
            o_ref[...] = dnorm2


def _exp_kernel(gamma_ref, d_ref, o_ref):
    o_ref[...] = jnp.exp(-gamma_ref[0, 0] * d_ref[...])


_VMEM_LIMIT = 48 * 1024 * 1024  # above the 16/32 MiB scoped defaults, < v7x's 64 MiB


def _pairwise_call(x, y, gamma=None, *, tm_cap=256, tn_cap=512, tk_cap=512):
    """Tiled pairwise squared distances (gamma is None) or fused RBF kernel
    values (gamma given). Returns the padded (Np, Mp) result and (tm, tn)."""
    n, d = x.shape
    m, _ = y.shape

    tm = min(tm_cap, _round_up(n, 8))
    tn = min(tn_cap, _round_up(m, 128))
    tk = min(tk_cap, _round_up(d, 128))
    np_, mp_, dp_ = _round_up(n, tm), _round_up(m, tn), _round_up(d, tk)

    xp = jnp.pad(x.astype(jnp.float32), ((0, np_ - n), (0, dp_ - d)))
    yp = jnp.pad(y.astype(jnp.float32), ((0, mp_ - m), (0, dp_ - d)))
    ytp = yp.T                                       # one-time (D, M) transpose in XLA
    xx = jnp.sum(xp * xp, axis=1, keepdims=True)     # (Np, 1)
    yy = jnp.sum(yp * yp, axis=1, keepdims=True).T   # (1, Mp)

    fuse_exp = gamma is not None
    gamma_arr = jnp.reshape(
        jnp.asarray(gamma if fuse_exp else 0.0, dtype=jnp.float32), (1, 1))

    grid = (np_ // tm, mp_ // tn, dp_ // tk)
    out = pl.pallas_call(
        functools.partial(_dist_kernel, fuse_exp=fuse_exp),
        out_shape=jax.ShapeDtypeStruct((np_, mp_), jnp.float32),
        grid=grid,
        in_specs=[
            pl.BlockSpec(memory_space=pltpu.MemorySpace.SMEM),      # gamma scalar
            pl.BlockSpec((tm, tk), lambda i, j, k: (i, k)),         # X tile
            pl.BlockSpec((tk, tn), lambda i, j, k: (k, j)),         # Y^T tile
            pl.BlockSpec((tm, 1), lambda i, j, k: (i, 0)),          # ||x||^2
            pl.BlockSpec((1, tn), lambda i, j, k: (0, j)),          # ||y||^2
        ],
        out_specs=pl.BlockSpec((tm, tn), lambda i, j, k: (i, j)),
        scratch_shapes=[pltpu.VMEM((tm, tn), jnp.float32)],
        compiler_params=pltpu.CompilerParams(
            dimension_semantics=("parallel", "parallel", "arbitrary"),
            vmem_limit_bytes=_VMEM_LIMIT),
        cost_estimate=pl.CostEstimate(
            flops=2 * np_ * mp_ * dp_,
            transcendentals=np_ * mp_ if fuse_exp else 0,
            bytes_accessed=4 * (np_ * dp_ + mp_ * dp_ + np_ * mp_)),
    )(gamma_arr, xp, ytp, xx, yy)
    return out, (tm, tn)


def _exp_scaled(dnorm2_padded, gamma, tm, tn):
    """Tiled exp(-gamma * dnorm2) reusing the dnorm2 HBM buffer."""
    np_, mp_ = dnorm2_padded.shape
    gamma_arr = jnp.reshape(jnp.asarray(gamma, dtype=jnp.float32), (1, 1))
    return pl.pallas_call(
        _exp_kernel,
        out_shape=jax.ShapeDtypeStruct((np_, mp_), jnp.float32),
        grid=(np_ // tm, mp_ // tn),
        in_specs=[
            pl.BlockSpec(memory_space=pltpu.MemorySpace.SMEM),
            pl.BlockSpec((tm, tn), lambda i, j: (i, j)),
        ],
        out_specs=pl.BlockSpec((tm, tn), lambda i, j: (i, j)),
        input_output_aliases={1: 0},
        compiler_params=pltpu.CompilerParams(
            dimension_semantics=("parallel", "parallel"),
            vmem_limit_bytes=_VMEM_LIMIT),
        cost_estimate=pl.CostEstimate(
            flops=np_ * mp_, transcendentals=np_ * mp_,
            bytes_accessed=8 * np_ * mp_),
    )(gamma_arr, dnorm2_padded)


def _median(t):
    # Matches torch: flatten, sort, mean of the middle element(s).
    flat = jnp.sort(t.reshape(-1))
    length = flat.shape[0]
    if length % 2 == 0:
        szh = length // 2
        return 0.5 * (flat[szh - 1] + flat[szh])
    return flat[(length - 1) // 2]


def rbf_forward(x, y, sigma=None, *, tm_cap=256, tn_cap=512, tk_cap=512):
    """Pallas implementation of RBF.forward(X, Y)."""
    x = x.astype(jnp.float32)
    y = y.astype(jnp.float32)
    n, _ = x.shape
    m, _ = y.shape

    if sigma is not None:
        # Fixed bandwidth: single fused (dnorm2 + exp) pass, no HBM round-trip.
        gamma = 1.0 / (2.0 * jnp.float32(sigma) ** 2)
        k_padded, _ = _pairwise_call(x, y, gamma,
                                     tm_cap=tm_cap, tn_cap=tn_cap, tk_cap=tk_cap)
        return k_padded[:n, :m]

    # Median bandwidth: materialize dnorm2, then a tiled aliased exp pass.
    dnorm2_padded, (tm, tn) = _pairwise_call(
        x, y, None, tm_cap=tm_cap, tn_cap=tn_cap, tk_cap=tk_cap)
    med = _median(dnorm2_padded[:n, :m])
    sig = med / (2.0 * jnp.float32(math.log(n + 1)))
    gamma = 1.0 / (2.0 * sig)
    k_padded = _exp_scaled(dnorm2_padded, gamma, tm, tn)
    return k_padded[:n, :m]


def _rbf_reference(x, y, sigma=None):
    # Pure-JAX reference for correctness checking.
    x = x.astype(jnp.float32)
    y = y.astype(jnp.float32)
    xy = x @ y.T
    xx = jnp.sum(x * x, axis=1, keepdims=True)
    yy = jnp.sum(y * y, axis=1, keepdims=True).T
    dnorm2 = -2.0 * xy + xx + yy
    if sigma is None:
        sig = _median(dnorm2) / (2.0 * jnp.float32(math.log(x.shape[0] + 1)))
    else:
        sig = jnp.float32(sigma) ** 2
    gamma = 1.0 / (2.0 * sig)
    return jnp.exp(-gamma * dnorm2)


if __name__ == "__main__":
    key = jax.random.PRNGKey(0)
    kx, ky = jax.random.split(key)

    # Small single-tile shapes.
    N, M, D = 8, 16, 32
    X = jax.random.normal(kx, (N, D), dtype=jnp.float32)
    Y = jax.random.normal(ky, (M, D), dtype=jnp.float32)

    K_XY = rbf_forward(X, Y)                       # sigma=None (median bandwidth)
    jax.block_until_ready(K_XY)
    assert K_XY.shape == (N, M)
    assert bool(jnp.allclose(K_XY, _rbf_reference(X, Y), rtol=1e-3, atol=1e-3))

    K_fixed = rbf_forward(X, Y, sigma=1.5)         # fused fixed-sigma path
    jax.block_until_ready(K_fixed)
    assert bool(jnp.allclose(K_fixed, _rbf_reference(X, Y, sigma=1.5),
                             rtol=1e-3, atol=1e-3))

    # Multi-tile path: exercises 3-D grid, D accumulation, padding, aliasing.
    k2x, k2y = jax.random.split(ky)
    N2, M2, D2 = 24, 300, 200
    X2 = jax.random.normal(k2x, (N2, D2), dtype=jnp.float32)
    Y2 = jax.random.normal(k2y, (M2, D2), dtype=jnp.float32)

    K2 = rbf_forward(X2, Y2, tm_cap=8, tn_cap=128, tk_cap=128)
    jax.block_until_ready(K2)
    assert K2.shape == (N2, M2)
    assert bool(jnp.allclose(K2, _rbf_reference(X2, Y2), rtol=1e-3, atol=1e-3))

    K2_fixed = rbf_forward(X2, Y2, sigma=2.0, tm_cap=8, tn_cap=128, tk_cap=128)
    jax.block_until_ready(K2_fixed)
    assert bool(jnp.allclose(K2_fixed, _rbf_reference(X2, Y2, sigma=2.0),
                             rtol=1e-3, atol=1e-3))

    print("KERNEL_OK")
</pallas_src>

<mosaic_0001>
module attributes {stable_mosaic.version = 11 : i64} {
  func.func @_dist_kernel(%arg0: i32, %arg1: i32, %arg2: i32, %arg3: memref<1x1xf32, #tpu.memory_space<smem>>, %arg4: memref<8x128xf32, #tpu.memory_space<vmem>>, %arg5: memref<128x128xf32, #tpu.memory_space<vmem>>, %arg6: memref<8x1xf32, #tpu.memory_space<vmem>>, %arg7: memref<1x128xf32, #tpu.memory_space<vmem>>, %arg8: memref<8x128xf32, #tpu.memory_space<vmem>>, %arg9: memref<8x128xf32, #tpu.memory_space<vmem>>) attributes {dimension_semantics = [#tpu.dimension_semantics<parallel>, #tpu.dimension_semantics<parallel>, #tpu.dimension_semantics<arbitrary>], iteration_bounds = array<i64: 1, 1, 1>, scalar_prefetch = 0 : i64, scratch_operands = 1 : i64, tpu.core_type = #tpu.core_type<tc>, window_params = [{transform_indices = @transform_0, window_bounds = array<i64: 1, 1>}, {transform_indices = @transform_1, window_bounds = array<i64: 8, 128>}, {transform_indices = @transform_2, window_bounds = array<i64: 128, 128>}, {transform_indices = @transform_3, window_bounds = array<i64: 8, 1>}, {transform_indices = @transform_4, window_bounds = array<i64: 1, 128>}, {transform_indices = @transform_5, window_bounds = array<i64: 8, 128>}]} {
    %c0_i32 = arith.constant 0 : i32
    %0 = arith.cmpi eq, %arg2, %c0_i32 : i32
    %1 = arith.extui %0 : i1 to i32
    %c0_i32_0 = arith.constant 0 : i32
    %2 = arith.cmpi ne, %1, %c0_i32_0 : i32
    scf.if %2 {
      %cst_10 = arith.constant 0.000000e+00 : f32
      %12 = vector.broadcast %cst_10 : f32 to vector<8x128xf32>
      %c0_11 = arith.constant 0 : index
      %c0_12 = arith.constant 0 : index
      %13 = vector.load %arg9[%c0_11, %c0_12] : memref<8x128xf32, #tpu.memory_space<vmem>>, vector<8x128xf32>
      tpu.vector_store %arg9[%c0_11, %c0_12], %12 {strides = array<i32>} : memref<8x128xf32, #tpu.memory_space<vmem>>, vector<8x128xf32>,
    } else {
    }
    %c0 = arith.constant 0 : index
    %c0_1 = arith.constant 0 : index
    %3 = vector.load %arg9[%c0, %c0_1] : memref<8x128xf32, #tpu.memory_space<vmem>>, vector<8x128xf32>
    %c0_2 = arith.constant 0 : index
    %c0_3 = arith.constant 0 : index
    %4 = vector.load %arg4[%c0_2, %c0_3] : memref<8x128xf32, #tpu.memory_space<vmem>>, vector<8x128xf32>
    %c0_4 = arith.constant 0 : index
    %c0_5 = arith.constant 0 : index
    %5 = vector.load %arg5[%c0_4, %c0_5] : memref<128x128xf32, #tpu.memory_space<vmem>>, vector<128x128xf32>
    %cst = arith.constant dense<0.000000e+00> : vector<8x128xf32>
    %6 = tpu.matmul %4, %5, %cst {dimension_numbers = #tpu.dot_dimension_numbers<[1], [0], [0], [1], [0, 0, 1, 1], [], []>} : vector<8x128xf32>, vector<128x128xf32>, vector<8x128xf32> -> vector<8x128xf32>
    %7 = arith.addf %3, %6 : vector<8x128xf32>
    %c0_6 = arith.constant 0 : index
    %c0_7 = arith.constant 0 : index
    %8 = vector.load %arg9[%c0_6, %c0_7] : memref<8x128xf32, #tpu.memory_space<vmem>>, vector<8x128xf32>
    tpu.vector_store %arg9[%c0_6, %c0_7], %7 {strides = array<i32>} : memref<8x128xf32, #tpu.memory_space<vmem>>, vector<8x128xf32>,
    %c0_i32_8 = arith.constant 0 : i32
    %9 = arith.cmpi eq, %arg2, %c0_i32_8 : i32
    %10 = arith.extui %9 : i1 to i32
    %c0_i32_9 = arith.constant 0 : i32
    %11 = arith.cmpi ne, %10, %c0_i32_9 : i32
    scf.if %11 {
      %c0_10 = arith.constant 0 : index
      %c0_11 = arith.constant 0 : index
      %12 = vector.load %arg9[%c0_10, %c0_11] : memref<8x128xf32, #tpu.memory_space<vmem>>, vector<8x128xf32>
      %cst_12 = arith.constant -2.000000e+00 : f32
      %13 = vector.broadcast %cst_12 : f32 to vector<8x128xf32>
      %14 = arith.mulf %13, %12 : vector<8x128xf32>
      %c0_13 = arith.constant 0 : index
      %c0_14 = arith.constant 0 : index
      %15 = vector.load %arg6[%c0_13, %c0_14] : memref<8x1xf32, #tpu.memory_space<vmem>>, vector<8x1xf32>
      %16 = vector.broadcast %15 : vector<8x1xf32> to vector<8x128xf32>
      %17 = arith.addf %14, %16 : vector<8x128xf32>
      %c0_15 = arith.constant 0 : index
      %c0_16 = arith.constant 0 : index
      %18 = vector.load %arg7[%c0_15, %c0_16] : memref<1x128xf32, #tpu.memory_space<vmem>>, vector<1x128xf32>
      %19 = vector.broadcast %18 : vector<1x128xf32> to vector<8x128xf32>
      %20 = arith.addf %17, %19 : vector<8x128xf32>
      %c0_17 = arith.constant 0 : index
      %c0_18 = arith.constant 0 : index
      %21 = vector.load %arg8[%c0_17, %c0_18] : memref<8x128xf32, #tpu.memory_space<vmem>>, vector<8x128xf32>
      tpu.vector_store %arg8[%c0_17, %c0_18], %20 {strides = array<i32>} : memref<8x128xf32, #tpu.memory_space<vmem>>, vector<8x128xf32>,
    } else {
    }
    return
  }
  func.func @transform_0(%arg0: i32, %arg1: i32, %arg2: i32) -> (i32, i32) {
    %c0_i32 = arith.constant 0 : i32
    %c0_i32_0 = arith.constant 0 : i32
    %c0_i32_1 = arith.constant 0 : i32
    return %c0_i32, %c0_i32_0 : i32, i32
  }
  func.func @transform_1(%arg0: i32, %arg1: i32, %arg2: i32) -> (i32, i32) {
    %c0_i32 = arith.constant 0 : i32
    return %arg0, %arg2 : i32, i32
  }
  func.func @transform_2(%arg0: i32, %arg1: i32, %arg2: i32) -> (i32, i32) {
    %c0_i32 = arith.constant 0 : i32
    return %arg2, %arg1 : i32, i32
  }
  func.func @transform_3(%arg0: i32, %arg1: i32, %arg2: i32) -> (i32, i32) {
    %c0_i32 = arith.constant 0 : i32
    %c0_i32_0 = arith.constant 0 : i32
    return %arg0, %c0_i32 : i32, i32
  }
  func.func @transform_4(%arg0: i32, %arg1: i32, %arg2: i32) -> (i32, i32) {
    %c0_i32 = arith.constant 0 : i32
    %c0_i32_0 = arith.constant 0 : i32
    return %c0_i32, %arg1 : i32, i32
  }
  func.func @transform_5(%arg0: i32, %arg1: i32, %arg2: i32) -> (i32, i32) {
    %c0_i32 = arith.constant 0 : i32
    return %arg0, %arg1 : i32, i32
  }
}

</mosaic_0001>

<llo_original>
// kernel: tpu_custom_call.1
$region0: #{tpu_custom_call.1}
  #allocation0 [shape = 'u32[]', space=smem, size = 0x4, offset = 0x4, fixed_abs, tag = 'smem constant byte address 0x4 - core index']
  #allocation1 [shape = 'u32[144,128]{1,0:T(1,128)}', space=vmem, size = 0x12000, scoped, tag = 'internal scratch']
  #allocation2 [shape = 'f32[8,128]{1,0:T(8,128)}', space=vmem, size = 0x1000, scoped, tag = 'scratch operand']
  #allocation3 [shape = 'f32[1,1]{1,0:T(1,128)S(6)}', space=smem, size = 0x200, scoped, tag = 'scoped memory for tpu_custom_call.1']
  %s0 = inlined_call_operand.<no memory space> [shape: f32[1,1], index: 0, kind: input, shape index: {}]
  %s1 = inlined_call_operand.vmem [shape: f32[8,128], index: 1, kind: input, shape index: {}]
  %s2 = inlined_call_operand.hbm [shape: f32[128,128], index: 2, kind: input, shape index: {}]
  %s3 = inlined_call_operand.vmem [shape: f32[8,1], index: 3, kind: input, shape index: {}]
  %s4 = inlined_call_operand.vmem [shape: f32[1,128], index: 4, kind: input, shape index: {}]
  %s5 = inlined_call_operand.hbm [shape: f32[8,128], index: 5, kind: output, shape index: {}]
  %s6 = sld [smem:[#allocation0]]
  $region42: #{tpu_custom_call.1} parent=0
    _
  %s8 = ssub.s32 1, %s6
  %s9 = scalar_select 0, %s8, %s6
  %10 = sst [smem:[#allocation3]] %s0
  $region1: #{tpu_custom_call.1} parent=0
    #allocation4 [shape = 'u8[65536]{0}', space=vmem, size = 0x10000, scoped, tag = 'input window, operand 2, single buffered']
    #allocation5 [shape = 's32[1]{0}', space=sflag, size = 0x4, scoped, tag = 'scoped memory for tpu_custom_call.1']
    #allocation6 [shape = 's32[1]{0}', space=sflag, size = 0x4, scoped, tag = 'scoped memory for tpu_custom_call.1']
    #allocation7 [shape = 'u8[4096]{0}', space=vmem, size = 0x1000, scoped, tag = 'output window, operand 0, single buffered']
    %11 = vsyncpa [#allocation5], 0
    %12 = vsyncpa [#allocation6], 0
    // Predicated region
    $region2: #{tpu_custom_call.1} parent=1 // pred_check
      _
    $region3: #{tpu_custom_call.1} parent=1 // pred_check_branch
      %14 = sbr.rel (0) target = $region5
    $region4: #{tpu_custom_call.1} parent=1 // pred_region
      _
    $region5: #{tpu_custom_call.1} parent=1 // pred_fallthru
      _
    // Predicated region
    $region6: #{tpu_custom_call.1} parent=1 // pred_check
      _
    $region7: #{tpu_custom_call.1} parent=1 // pred_check_branch
      %16 = sbr.rel (0) target = $region9
    $region8: #{tpu_custom_call.1} parent=1 // pred_region
      _
    $region9: #{tpu_custom_call.1} parent=1 // pred_fallthru
      _
    // Predicated region
    $region10: #{tpu_custom_call.1} parent=1 // pred_check
      _
    $region11: #{tpu_custom_call.1} parent=1 // pred_check_branch
      %18 = sbr.rel (0) target = $region13
    $region12: #{tpu_custom_call.1} parent=1 // pred_region
      %s20 = ssub.s32 2048, 2048
      %21 = vsyncadd [#allocation5], %s20
      %s22 = sshll.u32 [#allocation4], 4
      %s23 = int_to_ptr.vmem [resolvable:$true] %s22
      %28 = dma.hbm_to_vmem [thread:$0]  %s2, 2048, %s23, [#allocation5], 128, 128, 8
    $region13: #{tpu_custom_call.1} parent=1 // pred_fallthru
      _
    // Predicated region
    $region14: #{tpu_custom_call.1} parent=1 // pred_check
      _
    $region15: #{tpu_custom_call.1} parent=1 // pred_check_branch
      %30 = sbr.rel (0) target = $region17
    $region16: #{tpu_custom_call.1} parent=1 // pred_region
      _
    $region17: #{tpu_custom_call.1} parent=1 // pred_fallthru
      _
    // Predicated region
    $region18: #{tpu_custom_call.1} parent=1 // pred_check
      _
    $region19: #{tpu_custom_call.1} parent=1 // pred_check_branch
      %32 = sbr.rel (0) target = $region21
    $region20: #{tpu_custom_call.1} parent=1 // pred_region
      _
    $region21: #{tpu_custom_call.1} parent=1 // pred_fallthru
      _
    // Predicated region
    $region22: #{tpu_custom_call.1} parent=1 // pred_check
      _
    $region23: #{tpu_custom_call.1} parent=1 // pred_check_branch
      %34 = sbr.rel (0) target = $region25
    $region24: #{tpu_custom_call.1} parent=1 // pred_region
      %35 = dma.done [#allocation5], 2048
    $region25: #{tpu_custom_call.1} parent=1 // pred_fallthru
      _
    %p36 = scmp.eq.s32.totalorder 0, 0
    // Predicated region
    $region26: #{tpu_custom_call.1} parent=1 // pred_check
      %p37 = pneg %p36
    $region27: #{tpu_custom_call.1} parent=1 // pred_check_branch
      %39 = sbr.rel (%p37) target = $region29
    $region28: #{tpu_custom_call.1} parent=1 // pred_region
      %40 = vst [vmem:[#allocation2] sm:$0xff] 0.0
    $region29: #{tpu_custom_call.1} parent=1 // pred_fallthru
      _
    %v41 = vld [vmem:[#allocation2] sm:$0xff]
    %v42 = vld [vmem:[%s1] sm:$0xff]
    %v43 = vld [vmem:[#allocation4] sm:$0xff]
    %v44 = vld [vmem:[#allocation4 + $0x8] sm:$0xff]
    %v45 = vld [vmem:[#allocation4 + $0x10] sm:$0xff]
    %v46 = vld [vmem:[#allocation4 + $0x18] sm:$0xff]
    %v47 = vld [vmem:[#allocation4 + $0x20] sm:$0xff]
    %v48 = vld [vmem:[#allocation4 + $0x28] sm:$0xff]
    %v49 = vld [vmem:[#allocation4 + $0x30] sm:$0xff]
    %v50 = vld [vmem:[#allocation4 + $0x38] sm:$0xff]
    %v51 = vld [vmem:[#allocation4 + $0x40] sm:$0xff]
    %v52 = vld [vmem:[#allocation4 + $0x48] sm:$0xff]
    %v53 = vld [vmem:[#allocation4 + $0x50] sm:$0xff]
    %v54 = vld [vmem:[#allocation4 + $0x58] sm:$0xff]
    %v55 = vld [vmem:[#allocation4 + $0x60] sm:$0xff]
    %v56 = vld [vmem:[#allocation4 + $0x68] sm:$0xff]
    %v57 = vld [vmem:[#allocation4 + $0x70] sm:$0xff]
    %v58 = vld [vmem:[#allocation4 + $0x78] sm:$0xff]
    %59 = vmatprep.subr.mxu0 0.0
    %60 = vmatpush1.msra.mxu0 %v43
    %61 = vmatprep.subr.mxu0 0.0
    %62 = vmatpush1.msra.mxu0 %v44
    %63 = vmatprep.subr.mxu0 0.0
    %64 = vmatpush1.msra.mxu0 %v45
    %65 = vmatprep.subr.mxu0 0.0
    %66 = vmatpush1.msra.mxu0 %v46
    %67 = vmatprep.subr.mxu0 0.0
    %68 = vmatpush1.msra.mxu0 %v47
    %69 = vmatprep.subr.mxu0 0.0
    %70 = vmatpush1.msra.mxu0 %v48
    %71 = vmatprep.subr.mxu0 0.0
    %72 = vmatpush1.msra.mxu0 %v49
    %73 = vmatprep.subr.mxu0 0.0
    %74 = vmatpush1.msra.mxu0 %v50
    %75 = vmatprep.subr.mxu0 0.0
    %76 = vmatpush1.msra.mxu0 %v51
    %77 = vmatprep.subr.mxu0 0.0
    %78 = vmatpush1.msra.mxu0 %v52
    %79 = vmatprep.subr.mxu0 0.0
    %80 = vmatpush1.msra.mxu0 %v53
    %81 = vmatprep.subr.mxu0 0.0
    %82 = vmatpush1.msra.mxu0 %v54
    %83 = vmatprep.subr.mxu0 0.0
    %84 = vmatpush1.msra.mxu0 %v55
    %85 = vmatprep.subr.mxu0 0.0
    %86 = vmatpush1.msra.mxu0 %v56
    %87 = vmatprep.subr.mxu0 0.0
    %88 = vmatpush1.msra.mxu0 %v57
    %89 = vmatprep.subr.mxu0 0.0
    %90 = vmatpush1.msra.mxu0 %v58
    %91 = vmatprep.subr.mxu0 0.0
    %92 = vmatpush1.msra.mxu0 0.0
    %93 = vmatprep.subr.mxu0 0.0
    %94 = vmatpush1.msra.mxu0 0.0
    %95 = vmatprep.subr.mxu0 0.0
    %96 = vmatpush1.msra.mxu0 0.0
    %97 = vmatprep.subr.mxu0 0.0
    %98 = vmatpush1.msra.mxu0 0.0
    %99 = vmatprep.subr.mxu0 0.0
    %100 = vmatpush1.msra.mxu0 0.0
    %101 = vmatprep.subr.mxu0 0.0
    %102 = vmatpush1.msra.mxu0 0.0
    %103 = vmatprep.subr.mxu0 0.0
    %104 = vmatpush1.msra.mxu0 0.0
    %105 = vmatprep.subr.mxu0 0.0
    %106 = vmatpush1.msra.mxu0 0.0
    %107 = vmatprep.subr.mxu0 0.0
    %108 = vmatpush1.msra.mxu0 0.0
    %109 = vmatprep.subr.mxu0 0.0
    %110 = vmatpush1.msra.mxu0 0.0
    %111 = vmatprep.subr.mxu0 0.0
    %112 = vmatpush1.msra.mxu0 0.0
    %113 = vmatprep.subr.mxu0 0.0
    %114 = vmatpush1.msra.mxu0 0.0
    %115 = vmatprep.subr.mxu0 0.0
    %116 = vmatpush1.msra.mxu0 0.0
    %117 = vmatprep.subr.mxu0 0.0
    %118 = vmatpush1.msra.mxu0 0.0
    %119 = vmatprep.subr.mxu0 0.0
    %120 = vmatpush1.msra.mxu0 0.0
    %121 = vmatprep.subr.mxu0 0.0
    %122 = vmatpush1.msra.mxu0 0.0
    %123 = vmatprep.mubr.f32.mxu0 0.0
    %124 = vmatmul.mubr.f32.gmra.mrb[0].mxu0 %v42
    %v125 = vpop.f32.mrb[0].mxu0
    %v126 = vadd.f32 0.0, %v125
    %v127 = vpop.f32.mrb[0].mxu0
    %128 = vdwg.mxu0
    %v129 = vadd.f32 %v41, %v126
    %130 = vst [vmem:[#allocation2] sm:$0xff] %v129
    // Predicated region
    $region30: #{tpu_custom_call.1} parent=1 // pred_check
      %p131 = pneg %p36
    $region31: #{tpu_custom_call.1} parent=1 // pred_check_branch
      %133 = sbr.rel (%p131) target = $region33
    $region32: #{tpu_custom_call.1} parent=1 // pred_region
      %v134 = vld [vmem:[#allocation2] sm:$0xff]
      %v135 = vmul.f32 %v134, -2.0
      %v136 = vld [vmem:[%s3] sm:$0xff]
      %138 = vset.pattern.permute.xlu0 0
      %139 = vperm.xlu0 %138, %v136
      %v140 = vpop.permute.xlu0 %139
      %v142 = vadd.f32 %v135, %v140
      %v143 = vld [vmem:[%s4] sm:$0x1]
      %v145 = vlaneseq
      %v146 = vshrl.u32 %v145, 7
      %v147 = vsub.s32 0, %v146
      %v148 = vrot.slane %v143, %v147
      %v150 = vadd.f32 %v142, %v148
      %151 = vst [vmem:[#allocation7] sm:$0xff] %v150
    $region33: #{tpu_custom_call.1} parent=1 // pred_fallthru
      _
    // Predicated region
    $region34: #{tpu_custom_call.1} parent=1 // pred_check
      _
    $region35: #{tpu_custom_call.1} parent=1 // pred_check_branch
      %153 = sbr.rel (0) target = $region37
    $region36: #{tpu_custom_call.1} parent=1 // pred_region
      %s155 = ssub.s32 128, 128
      %156 = vsyncadd [#allocation6], %s155
      %s158 = sshll.u32 [#allocation7], 4
      %s159 = int_to_ptr.vmem [resolvable:$true] %s158
      %161 = dma.vmem_to_hbm [thread:$0]  %s159, 128, %s5, [#allocation6]
    $region37: #{tpu_custom_call.1} parent=1 // pred_fallthru
      _
    // Predicated region
    $region38: #{tpu_custom_call.1} parent=1 // pred_check
      _
    $region39: #{tpu_custom_call.1} parent=1 // pred_check_branch
      %163 = sbr.rel (0) target = $region41
    $region40: #{tpu_custom_call.1} parent=1 // pred_region
      %164 = dma.done [#allocation6], 128
    $region41: #{tpu_custom_call.1} parent=1 // pred_fallthru
      _
    %165 = vsyncpa [#allocation5], 1
    %166 = vsyncpa [#allocation6], 1

</llo_original>
